<compile_context>
chip_gen: v7x
topology: tpu7x:2x2x1
jax: 0.10.0
libtpu: 0.0.40
codegen_flags: <defaults>
</compile_context>

<pallas_src>
import functools

import jax
import jax.numpy as jnp
from jax.experimental import pallas as pl
from jax.experimental.pallas import tpu as pltpu

HIDDEN = 128          # per-head hidden width (module spec)
LANE_OUT = 128        # lane-dense fused output width


def actor_critic_kernel(state_ref, w1_ref, b1_ref, w2_ref, b2_ref, out_ref,
                        *, action_dim):
    x = state_ref[...]                                                # (TB, S) f32

    # fused layer 1: [actor | critic] hidden in one MXU pass -> (TB, 2H)
    h = jnp.dot(x, w1_ref[...], preferred_element_type=jnp.float32) + b1_ref[...]
    h = jnp.maximum(h, 0.0)                                           # shared ReLU

    # fused layer 2 (block-diagonal, lane-padded): (TB, 128)
    #   lanes 0..A-1 = actor logits, lane A = critic value, rest = 0
    y = jnp.dot(h, w2_ref[...], preferred_element_type=jnp.float32) + b2_ref[...]

    lane = jax.lax.broadcasted_iota(jnp.int32, y.shape, 1)
    is_action = lane < action_dim
    is_value = lane == action_dim

    # numerically-stable softmax restricted to the action lanes
    masked = jnp.where(is_action, y, -jnp.inf)
    m = jnp.max(masked, axis=-1, keepdims=True)
    e = jnp.exp(masked - m)                       # non-action lanes -> exp(-inf)=0
    denom = jnp.sum(e, axis=-1, keepdims=True)
    r = pl.reciprocal(denom, approx=True)         # EUP vrcp
    r = r * (2.0 - denom * r)                     # one Newton step -> ~1e-7 rel err
    probs = e * r

    # single lane-dense store: probs in action lanes, value in lane A, 0 elsewhere
    out_ref[...] = jnp.where(is_value, y, probs)


def pack_params(params):
    """Fuse the 8 per-head tensors into 4 kernel operands.

    Call ONCE at init (and after each optimizer step), NOT per forward call:
    the two concats, the zeros, and the scatter updates are separate XLA ops
    that for small RL rollout batches can cost more than the kernel itself.
    """
    H = HIDDEN
    A = params["wa2"].shape[1]
    assert A + 1 <= LANE_OUT, "action_dim + 1 must fit in one 128-lane output tile"
    w1 = jnp.concatenate([params["wa1"], params["wc1"]], axis=1)       # (S, 2H)
    b1 = jnp.concatenate([params["ba1"], params["bc1"]], axis=1)       # (1, 2H)
    w2 = jnp.zeros((2 * H, LANE_OUT), jnp.float32)
    w2 = w2.at[:H, :A].set(params["wa2"])                              # actor block
    w2 = w2.at[H:, A].set(params["wc2"][:, 0])                         # critic column
    b2 = jnp.zeros((1, LANE_OUT), jnp.float32)
    b2 = b2.at[0, :A].set(params["ba2"][0])
    b2 = b2.at[0, A].set(params["bc2"][0, 0])
    return dict(w1=w1, b1=b1, w2=w2, b2=b2, action_dim=A)


def _choose_batch_tile(B):
    """HBM/overhead-bound kernel: amortize the ~0.35 us per-step cost.

    - B < 1024: one tile covering the whole batch (grid=(1,)); nothing more to
      do for megacore at these sizes.
    - B >= 1024: >=2 tiles (even grid for moderate B -> both v7x TensorCores
      work), each 512..4096 rows, which sits at >=85% of the HBM roofline on
      v5e/v6e/v7x.  Peak VMEM at tb=4096 is ~11 MB, well under the 32 MiB
      default scoped limit, so no vmem_limit_bytes override is needed.
    """
    if B < 1024:
        return B                                   # block == full dim, always legal
    tb = min(4096, pl.cdiv(B, 2))
    return ((tb + 7) // 8) * 8                     # (8, 128) sublane alignment


@functools.partial(jax.jit, static_argnames=("action_dim",))
def actor_critic_forward_packed(state, w1, b1, w2, b2, *, action_dim):
    """Returns the packed (B, 128) buffer: probs in lanes 0..A-1, value in lane A.

    Preferred entry point when the consumer can index the packed buffer
    directly (avoids a second HBM pass over the padded output).
    """
    B, S = state.shape
    tb = _choose_batch_tile(B)
    grid = (pl.cdiv(B, tb),)                       # partial last tile handled by Pallas

    # constant index_map -> weights stay VMEM-resident; Pallas skips the re-DMA
    # when the block index does not change between grid steps.
    const = lambda shape: pl.BlockSpec(shape, lambda i: (0, 0))

    return pl.pallas_call(
        functools.partial(actor_critic_kernel, action_dim=action_dim),
        out_shape=jax.ShapeDtypeStruct((B, LANE_OUT), jnp.float32),
        grid=grid,
        in_specs=[
            pl.BlockSpec((tb, S), lambda i: (i, 0)),                   # state
            const(w1.shape), const(b1.shape),                          # fused layer 1
            const(w2.shape), const(b2.shape),                          # fused layer 2
        ],
        out_specs=pl.BlockSpec((tb, LANE_OUT), lambda i: (i, 0)),
        compiler_params=pltpu.CompilerParams(
            dimension_semantics=("parallel",)),                        # 2-TC shard on v7x
    )(state, w1, b1, w2, b2)


@functools.partial(jax.jit, static_argnames=("action_dim",))
def actor_critic_forward(state, w1, b1, w2, b2, *, action_dim):
    """PyTorch-module-compatible interface: (action_probs, state_value)."""
    out = actor_critic_forward_packed(state, w1, b1, w2, b2, action_dim=action_dim)
    # Slices are inside this jit so they fuse with any caller-side jit; for
    # pure-throughput paths prefer actor_critic_forward_packed and slice at
    # the consumption site instead.
    return out[:, :action_dim], out[:, action_dim:action_dim + 1]


def init_params(key, state_dim, action_dim, hidden=HIDDEN):
    """Deterministic init; shapes match nn.Linear but stored transposed (in, out)."""
    ks = jax.random.split(key, 8)

    def lin(kw, kb, fan_in, fan_out):
        bound = 1.0 / jnp.sqrt(fan_in)
        w = jax.random.uniform(kw, (fan_in, fan_out), jnp.float32, -bound, bound)
        b = jax.random.uniform(kb, (1, fan_out), jnp.float32, -bound, bound)
        return w, b

    wa1, ba1 = lin(ks[0], ks[1], state_dim, hidden)
    wa2, ba2 = lin(ks[2], ks[3], hidden, action_dim)
    wc1, bc1 = lin(ks[4], ks[5], state_dim, hidden)
    wc2, bc2 = lin(ks[6], ks[7], hidden, 1)
    return dict(wa1=wa1, ba1=ba1, wa2=wa2, ba2=ba2,
                wc1=wc1, bc1=bc1, wc2=wc2, bc2=bc2)


def _reference(state, params):
    h_a = jnp.maximum(state @ params["wa1"] + params["ba1"], 0.0)
    ref_probs = jax.nn.softmax(h_a @ params["wa2"] + params["ba2"], axis=-1)
    h_c = jnp.maximum(state @ params["wc1"] + params["bc1"], 0.0)
    ref_value = h_c @ params["wc2"] + params["bc2"]
    return ref_probs, ref_value


if __name__ == "__main__":
    key = jax.random.PRNGKey(0)
    k_state, k_params, k_big = jax.random.split(key, 3)

    STATE_DIM, ACTION_DIM = 16, 8
    params = init_params(k_params, STATE_DIM, ACTION_DIM)

    # pack ONCE (perf feedback): not re-packed on every forward call
    packed = jax.block_until_ready(pack_params(params))
    A = packed["action_dim"]

    # --- small rollout-sized batch (single tile, grid=(1,)) ---
    B = 8
    state = jax.random.normal(k_state, (B, STATE_DIM), jnp.float32)
    probs, value = actor_critic_forward(
        state, packed["w1"], packed["b1"], packed["w2"], packed["b2"], action_dim=A)
    probs, value = jax.block_until_ready((probs, value))

    assert probs.shape == (B, ACTION_DIM)
    assert value.shape == (B, 1)
    assert jnp.allclose(jnp.sum(probs, axis=-1), 1.0, atol=1e-5)
    ref_probs, ref_value = _reference(state, params)
    assert jnp.allclose(probs, ref_probs, atol=1e-5)
    assert jnp.allclose(value, ref_value, atol=1e-5)

    # --- larger, non-multiple batch: exercises the multi-tile cdiv grid with a
    #     partial last tile (megacore path on v7x) ---
    B2 = 1032
    state2 = jax.random.normal(k_big, (B2, STATE_DIM), jnp.float32)
    probs2, value2 = actor_critic_forward(
        state2, packed["w1"], packed["b1"], packed["w2"], packed["b2"], action_dim=A)
    probs2, value2 = jax.block_until_ready((probs2, value2))

    assert probs2.shape == (B2, ACTION_DIM)
    assert value2.shape == (B2, 1)
    ref_probs2, ref_value2 = _reference(state2, params)
    assert jnp.allclose(probs2, ref_probs2, atol=1e-5)
    assert jnp.allclose(value2, ref_value2, atol=1e-5)

    print("KERNEL_OK")
</pallas_src>

<mosaic_0001>
module attributes {stable_mosaic.version = 11 : i64} {
  func.func @actor_critic_kernel(%arg0: i32, %arg1: memref<8x16xf32, #tpu.memory_space<vmem>>, %arg2: memref<16x256xf32, #tpu.memory_space<vmem>>, %arg3: memref<1x256xf32, #tpu.memory_space<vmem>>, %arg4: memref<256x128xf32, #tpu.memory_space<vmem>>, %arg5: memref<1x128xf32, #tpu.memory_space<vmem>>, %arg6: memref<8x128xf32, #tpu.memory_space<vmem>>) attributes {dimension_semantics = [#tpu.dimension_semantics<parallel>], iteration_bounds = array<i64: 1>, scalar_prefetch = 0 : i64, scratch_operands = 0 : i64, tpu.core_type = #tpu.core_type<tc>, window_params = [{transform_indices = @transform_0, window_bounds = array<i64: 8, 16>}, {pipeline_mode = #tpu.pipeline_mode<synchronous>, transform_indices = @transform_1, window_bounds = array<i64: 16, 256>}, {pipeline_mode = #tpu.pipeline_mode<synchronous>, transform_indices = @transform_2, window_bounds = array<i64: 1, 256>}, {pipeline_mode = #tpu.pipeline_mode<synchronous>, transform_indices = @transform_3, window_bounds = array<i64: 256, 128>}, {pipeline_mode = #tpu.pipeline_mode<synchronous>, transform_indices = @transform_4, window_bounds = array<i64: 1, 128>}, {transform_indices = @transform_5, window_bounds = array<i64: 8, 128>}]} {
    %c0 = arith.constant 0 : index
    %c0_0 = arith.constant 0 : index
    %0 = vector.load %arg1[%c0, %c0_0] : memref<8x16xf32, #tpu.memory_space<vmem>>, vector<8x16xf32>
    %c0_1 = arith.constant 0 : index
    %c0_2 = arith.constant 0 : index
    %1 = vector.load %arg2[%c0_1, %c0_2] : memref<16x256xf32, #tpu.memory_space<vmem>>, vector<16x256xf32>
    %cst = arith.constant dense<0.000000e+00> : vector<8x256xf32>
    %2 = tpu.matmul %0, %1, %cst {dimension_numbers = #tpu.dot_dimension_numbers<[1], [0], [0], [1], [0, 0, 1, 1], [], []>} : vector<8x16xf32>, vector<16x256xf32>, vector<8x256xf32> -> vector<8x256xf32>
    %c0_3 = arith.constant 0 : index
    %c0_4 = arith.constant 0 : index
    %3 = vector.load %arg3[%c0_3, %c0_4] : memref<1x256xf32, #tpu.memory_space<vmem>>, vector<1x256xf32>
    %4 = vector.broadcast %3 : vector<1x256xf32> to vector<8x256xf32>
    %5 = arith.addf %2, %4 : vector<8x256xf32>
    %cst_5 = arith.constant 0.000000e+00 : f32
    %6 = vector.broadcast %cst_5 : f32 to vector<8x256xf32>
    %7 = arith.maximumf %5, %6 : vector<8x256xf32>
    %c0_6 = arith.constant 0 : index
    %c0_7 = arith.constant 0 : index
    %8 = vector.load %arg4[%c0_6, %c0_7] : memref<256x128xf32, #tpu.memory_space<vmem>>, vector<256x128xf32>
    %cst_8 = arith.constant dense<0.000000e+00> : vector<8x128xf32>
    %9 = tpu.matmul %7, %8, %cst_8 {dimension_numbers = #tpu.dot_dimension_numbers<[1], [0], [0], [1], [0, 0, 1, 1], [], []>} : vector<8x256xf32>, vector<256x128xf32>, vector<8x128xf32> -> vector<8x128xf32>
    %c0_9 = arith.constant 0 : index
    %c0_10 = arith.constant 0 : index
    %10 = vector.load %arg5[%c0_9, %c0_10] : memref<1x128xf32, #tpu.memory_space<vmem>>, vector<1x128xf32>
    %11 = vector.broadcast %10 : vector<1x128xf32> to vector<8x128xf32>
    %12 = arith.addf %9, %11 : vector<8x128xf32>
    %13 = tpu.iota {dimensions = array<i32: 1>} : vector<8x128xi32>
    %c8_i32 = arith.constant 8 : i32
    %14 = vector.broadcast %c8_i32 : i32 to vector<8x128xi32>
    %15 = arith.cmpi slt, %13, %14 : vector<8x128xi32>
    %c8_i32_11 = arith.constant 8 : i32
    %16 = vector.broadcast %c8_i32_11 : i32 to vector<8x128xi32>
    %17 = arith.cmpi eq, %13, %16 : vector<8x128xi32>
    %cst_12 = arith.constant 0xFF800000 : f32
    %18 = vector.broadcast %cst_12 : f32 to vector<8x128xf32>
    %19 = arith.select %15, %12, %18 : vector<8x128xi1>, vector<8x128xf32>
    %cst_13 = arith.constant dense<0xFF800000> : vector<8xf32>
    %20 = vector.multi_reduction <maximumf>, %19, %cst_13 [1] : vector<8x128xf32> to vector<8xf32>
    %21 = vector.shape_cast %20 : vector<8xf32> to vector<8x1xf32>
    %22 = vector.broadcast %21 : vector<8x1xf32> to vector<8x128xf32>
    %23 = arith.subf %19, %22 : vector<8x128xf32>
    %24 = math.exp %23 : vector<8x128xf32>
    %cst_14 = arith.constant dense<0.000000e+00> : vector<8xf32>
    %25 = vector.multi_reduction <add>, %24, %cst_14 [1] : vector<8x128xf32> to vector<8xf32>
    %26 = vector.shape_cast %25 : vector<8xf32> to vector<8x1xf32>
    %27 = tpu.reciprocal %26 {approx = true} : vector<8x1xf32> -> vector<8x1xf32>
    %28 = arith.mulf %26, %27 : vector<8x1xf32>
    %cst_15 = arith.constant 2.000000e+00 : f32
    %29 = vector.broadcast %cst_15 : f32 to vector<8x1xf32>
    %30 = arith.subf %29, %28 : vector<8x1xf32>
    %31 = arith.mulf %27, %30 : vector<8x1xf32>
    %32 = vector.broadcast %31 : vector<8x1xf32> to vector<8x128xf32>
    %33 = arith.mulf %24, %32 : vector<8x128xf32>
    %34 = arith.select %17, %12, %33 : vector<8x128xi1>, vector<8x128xf32>
    %c0_16 = arith.constant 0 : index
    %c0_17 = arith.constant 0 : index
    %35 = vector.load %arg6[%c0_16, %c0_17] : memref<8x128xf32, #tpu.memory_space<vmem>>, vector<8x128xf32>
    tpu.vector_store %arg6[%c0_16, %c0_17], %34 {strides = array<i32>} : memref<8x128xf32, #tpu.memory_space<vmem>>, vector<8x128xf32>,
    return
  }
  func.func @transform_0(%arg0: i32) -> (i32, i32) {
    %c0_i32 = arith.constant 0 : i32
    %c0_i32_0 = arith.constant 0 : i32
    return %arg0, %c0_i32 : i32, i32
  }
  func.func @transform_1(%arg0: i32) -> (i32, i32) {
    %c0_i32 = arith.constant 0 : i32
    %c0_i32_0 = arith.constant 0 : i32
    %c0_i32_1 = arith.constant 0 : i32
    return %c0_i32, %c0_i32_0 : i32, i32
  }
  func.func @transform_2(%arg0: i32) -> (i32, i32) {
    %c0_i32 = arith.constant 0 : i32
    %c0_i32_0 = arith.constant 0 : i32
    %c0_i32_1 = arith.constant 0 : i32
    return %c0_i32, %c0_i32_0 : i32, i32
  }
  func.func @transform_3(%arg0: i32) -> (i32, i32) {
    %c0_i32 = arith.constant 0 : i32
    %c0_i32_0 = arith.constant 0 : i32
    %c0_i32_1 = arith.constant 0 : i32
    return %c0_i32, %c0_i32_0 : i32, i32
  }
  func.func @transform_4(%arg0: i32) -> (i32, i32) {
    %c0_i32 = arith.constant 0 : i32
    %c0_i32_0 = arith.constant 0 : i32
    %c0_i32_1 = arith.constant 0 : i32
    return %c0_i32, %c0_i32_0 : i32, i32
  }
  func.func @transform_5(%arg0: i32) -> (i32, i32) {
    %c0_i32 = arith.constant 0 : i32
    %c0_i32_0 = arith.constant 0 : i32
    return %arg0, %c0_i32 : i32, i32
  }
}

</mosaic_0001>

<llo_original>
// kernel: actor_critic_forward_packed.1
$region0: #{actor_critic_forward_packed.1}
  #allocation0 [shape = 'u32[]', space=smem, size = 0x4, offset = 0x4, fixed_abs, tag = 'smem constant byte address 0x4 - core index']
  #allocation1 [shape = 'u32[144,128]{1,0:T(1,128)}', space=vmem, size = 0x12000, scoped, tag = 'internal scratch']
  %s0 = inlined_call_operand.hbm [shape: f32[8,16], index: 0, kind: input, shape index: {}]
  %s1 = inlined_call_operand.hbm [shape: f32[16,256], index: 1, kind: input, shape index: {}]
  %s2 = inlined_call_operand.vmem [shape: f32[1,256], index: 2, kind: input, shape index: {}]
  %s3 = inlined_call_operand.hbm [shape: f32[256,128], index: 3, kind: input, shape index: {}]
  %s4 = inlined_call_operand.vmem [shape: f32[1,128], index: 4, kind: input, shape index: {}]
  %s5 = inlined_call_operand.hbm [shape: f32[8,128], index: 5, kind: output, shape index: {}]
  %s6 = sld [smem:[#allocation0]]
  $region42: #{actor_critic_forward_packed.1} parent=0
    _
  %s8 = ssub.s32 1, %s6
  %s9 = scalar_select 0, %s8, %s6
  $region1: #{actor_critic_forward_packed.1} parent=0
    #allocation2 [shape = 'u8[4096]{0}', space=vmem, size = 0x1000, scoped, tag = 'input window, operand 0, single buffered']
    #allocation3 [shape = 's32[1]{0}', space=sflag, size = 0x4, scoped, tag = 'scoped memory for actor_critic_forward_packed.1']
    #allocation4 [shape = 's32[1]{0}', space=sflag, size = 0x4, scoped, tag = 'scoped memory for actor_critic_forward_packed.1']
    #allocation5 [shape = 'u8[16384]{0}', space=vmem, size = 0x4000, scoped, tag = 'input window, operand 1, single buffered']
    #allocation6 [shape = 's32[1]{0}', space=sflag, size = 0x4, scoped, tag = 'scoped memory for actor_critic_forward_packed.1']
    #allocation7 [shape = 'u8[131072]{0}', space=vmem, size = 0x20000, scoped, tag = 'input window, operand 3, single buffered']
    #allocation8 [shape = 'u8[4096]{0}', space=vmem, size = 0x1000, scoped, tag = 'output window, operand 0, single buffered']
    %10 = vsyncpa [#allocation3], 0
    %11 = vsyncpa [#allocation6], 0
    %12 = vsyncpa [#allocation4], 0
    // Predicated region
    $region2: #{actor_critic_forward_packed.1} parent=1 // pred_check
      _
    $region3: #{actor_critic_forward_packed.1} parent=1 // pred_check_branch
      %14 = sbr.rel (0) target = $region5
    $region4: #{actor_critic_forward_packed.1} parent=1 // pred_region
      %s16 = ssub.s32 128, 128
      %17 = vsyncadd [#allocation3], %s16
      %s19 = sshll.u32 [#allocation2], 4
      %s20 = int_to_ptr.vmem [resolvable:$true] %s19
      %22 = dma.hbm_to_vmem [thread:$0]  %s0, 128, %s20, [#allocation3]
    $region5: #{actor_critic_forward_packed.1} parent=1 // pred_fallthru
      _
    // Predicated region
    $region6: #{actor_critic_forward_packed.1} parent=1 // pred_check
      _
    $region7: #{actor_critic_forward_packed.1} parent=1 // pred_check_branch
      %24 = sbr.rel (0) target = $region9
    $region8: #{actor_critic_forward_packed.1} parent=1 // pred_region
      %s26 = ssub.s32 512, 512
      %27 = vsyncadd [#allocation6], %s26
      %s28 = sshll.u32 [#allocation5], 4
      %s29 = int_to_ptr.vmem [resolvable:$true] %s28
      %34 = dma.hbm_to_vmem [thread:$0]  %s1, 512, %s29, [#allocation6], 256, 256, 16
    $region9: #{actor_critic_forward_packed.1} parent=1 // pred_fallthru
      _
    // Predicated region
    $region10: #{actor_critic_forward_packed.1} parent=1 // pred_check
      _
    $region11: #{actor_critic_forward_packed.1} parent=1 // pred_check_branch
      %36 = sbr.rel (0) target = $region13
    $region12: #{actor_critic_forward_packed.1} parent=1 // pred_region
      _
    $region13: #{actor_critic_forward_packed.1} parent=1 // pred_fallthru
      _
    // Predicated region
    $region14: #{actor_critic_forward_packed.1} parent=1 // pred_check
      _
    $region15: #{actor_critic_forward_packed.1} parent=1 // pred_check_branch
      %38 = sbr.rel (0) target = $region17
    $region16: #{actor_critic_forward_packed.1} parent=1 // pred_region
      %s40 = ssub.s32 4096, 4096
      %41 = vsyncadd [#allocation6], %s40
      %s42 = sshll.u32 [#allocation7], 4
      %s43 = int_to_ptr.vmem [resolvable:$true] %s42
      %48 = dma.hbm_to_vmem [thread:$0]  %s3, 4096, %s43, [#allocation6], 128, 128, 8
    $region17: #{actor_critic_forward_packed.1} parent=1 // pred_fallthru
      _
    // Predicated region
    $region18: #{actor_critic_forward_packed.1} parent=1 // pred_check
      _
    $region19: #{actor_critic_forward_packed.1} parent=1 // pred_check_branch
      %50 = sbr.rel (0) target = $region21
    $region20: #{actor_critic_forward_packed.1} parent=1 // pred_region
      _
    $region21: #{actor_critic_forward_packed.1} parent=1 // pred_fallthru
      _
    // Predicated region
    $region22: #{actor_critic_forward_packed.1} parent=1 // pred_check
      _
    $region23: #{actor_critic_forward_packed.1} parent=1 // pred_check_branch
      %52 = sbr.rel (0) target = $region25
    $region24: #{actor_critic_forward_packed.1} parent=1 // pred_region
      %53 = dma.done [#allocation3], 128
    $region25: #{actor_critic_forward_packed.1} parent=1 // pred_fallthru
      _
    // Predicated region
    $region26: #{actor_critic_forward_packed.1} parent=1 // pred_check
      _
    $region27: #{actor_critic_forward_packed.1} parent=1 // pred_check_branch
      %55 = sbr.rel (0) target = $region29
    $region28: #{actor_critic_forward_packed.1} parent=1 // pred_region
      %56 = dma.done [#allocation6], 512
    $region29: #{actor_critic_forward_packed.1} parent=1 // pred_fallthru
      _
    // Predicated region
    $region30: #{actor_critic_forward_packed.1} parent=1 // pred_check
      _
    $region31: #{actor_critic_forward_packed.1} parent=1 // pred_check_branch
      %58 = sbr.rel (0) target = $region33
    $region32: #{actor_critic_forward_packed.1} parent=1 // pred_region
      %59 = dma.done [#allocation6], 4096
    $region33: #{actor_critic_forward_packed.1} parent=1 // pred_fallthru
      _
    %v60 = vld [vmem:[#allocation2] sm:$0xff]
    %v61 = vld [vmem:[#allocation5] sm:$0xff]
    %v62 = vld [vmem:[#allocation5 + $0x8] sm:$0xff]
    %v63 = vld [vmem:[#allocation5 + $0x10] sm:$0xff]
    %v64 = vld [vmem:[#allocation5 + $0x18] sm:$0xff]
    %v65 = vld [vmem:[%s2] sm:$0x3]
    %v67 = vlaneseq
    %v68 = vshrl.u32 %v67, 7
    %v69 = vsub.s32 0, %v68
    %v70 = vrot.slane %v65, %v69
    %v71 = vlaneseq
    %v72 = vshrl.u32 %v71, 7
    %v73 = vsub.s32 1, %v72
    %v74 = vrot.slane %v65, %v73
    %vm77 = vcmask 130048
    %v79 = vsel %vm77, %v60, 0
    %81 = vmatprep.subr.mxu0 %v62
    %82 = vmatpush1.msra.mxu0 %v61
    %83 = vmatprep.subr.mxu0 %v64
    %84 = vmatpush1.msra.mxu0 %v63
    %85 = vmatprep.subr.mxu0 0.0
    %86 = vmatpush1.msra.mxu0 0.0
    %87 = vmatprep.subr.mxu0 0.0
    %88 = vmatpush1.msra.mxu0 0.0
    %89 = vmatprep.subr.mxu0 0.0
    %90 = vmatpush1.msra.mxu0 0.0
    %91 = vmatprep.subr.mxu0 0.0
    %92 = vmatpush1.msra.mxu0 0.0
    %93 = vmatprep.subr.mxu0 0.0
    %94 = vmatpush1.msra.mxu0 0.0
    %95 = vmatprep.subr.mxu0 0.0
    %96 = vmatpush1.msra.mxu0 0.0
    %97 = vmatprep.subr.mxu0 0.0
    %98 = vmatpush1.msra.mxu0 0.0
    %99 = vmatprep.subr.mxu0 0.0
    %100 = vmatpush1.msra.mxu0 0.0
    %101 = vmatprep.subr.mxu0 0.0
    %102 = vmatpush1.msra.mxu0 0.0
    %103 = vmatprep.subr.mxu0 0.0
    %104 = vmatpush1.msra.mxu0 0.0
    %105 = vmatprep.subr.mxu0 0.0
    %106 = vmatpush1.msra.mxu0 0.0
    %107 = vmatprep.subr.mxu0 0.0
    %108 = vmatpush1.msra.mxu0 0.0
    %109 = vmatprep.subr.mxu0 0.0
    %110 = vmatpush1.msra.mxu0 0.0
    %111 = vmatprep.subr.mxu0 0.0
    %112 = vmatpush1.msra.mxu0 0.0
    %113 = vmatprep.subr.mxu0 0.0
    %114 = vmatpush1.msra.mxu0 0.0
    %115 = vmatprep.subr.mxu0 0.0
    %116 = vmatpush1.msra.mxu0 0.0
    %117 = vmatprep.subr.mxu0 0.0
    %118 = vmatpush1.msra.mxu0 0.0
    %119 = vmatprep.subr.mxu0 0.0
    %120 = vmatpush1.msra.mxu0 0.0
    %121 = vmatprep.subr.mxu0 0.0
    %122 = vmatpush1.msra.mxu0 0.0
    %123 = vmatprep.subr.mxu0 0.0
    %124 = vmatpush1.msra.mxu0 0.0
    %125 = vmatprep.subr.mxu0 0.0
    %126 = vmatpush1.msra.mxu0 0.0
    %127 = vmatprep.subr.mxu0 0.0
    %128 = vmatpush1.msra.mxu0 0.0
    %129 = vmatprep.subr.mxu0 0.0
    %130 = vmatpush1.msra.mxu0 0.0
    %131 = vmatprep.subr.mxu0 0.0
    %132 = vmatpush1.msra.mxu0 0.0
    %133 = vmatprep.subr.mxu0 0.0
    %134 = vmatpush1.msra.mxu0 0.0
    %135 = vmatprep.subr.mxu0 0.0
    %136 = vmatpush1.msra.mxu0 0.0
    %137 = vmatprep.subr.mxu0 0.0
    %138 = vmatpush1.msra.mxu0 0.0
    %139 = vmatprep.subr.mxu0 0.0
    %140 = vmatpush1.msra.mxu0 0.0
    %141 = vmatprep.subr.mxu0 0.0
    %142 = vmatpush1.msra.mxu0 0.0
    %143 = vmatprep.subr.mxu0 0.0
    %144 = vmatpush1.msra.mxu0 0.0
    %145 = vmatprep.mubr.f32.mxu0 0.0
    %146 = vmatmul.mubr.f32.gmra.mrb[0].mxu0 %v79
    %v147 = vpop.f32.mrb[0].mxu0
    %v148 = vadd.f32 %v70, %v147
    %v149 = vpop.f32.mrb[0].mxu0
    %v150 = vadd.f32 %v74, %v149
    %151 = vdwg.mxu0
    %v152 = vmax.f32 %v148, 0.0
    %v153 = vmax.f32 %v150, 0.0
    %v154 = vld [vmem:[#allocation7] sm:$0xff]
    %v155 = vld [vmem:[#allocation7 + $0x8] sm:$0xff]
    %v156 = vld [vmem:[#allocation7 + $0x10] sm:$0xff]
    %v157 = vld [vmem:[#allocation7 + $0x18] sm:$0xff]
    %v158 = vld [vmem:[#allocation7 + $0x20] sm:$0xff]
    %v159 = vld [vmem:[#allocation7 + $0x28] sm:$0xff]
    %v160 = vld [vmem:[#allocation7 + $0x30] sm:$0xff]
    %v161 = vld [vmem:[#allocation7 + $0x38] sm:$0xff]
    %v162 = vld [vmem:[#allocation7 + $0x40] sm:$0xff]
    %v163 = vld [vmem:[#allocation7 + $0x48] sm:$0xff]
    %v164 = vld [vmem:[#allocation7 + $0x50] sm:$0xff]
    %v165 = vld [vmem:[#allocation7 + $0x58] sm:$0xff]
    %v166 = vld [vmem:[#allocation7 + $0x60] sm:$0xff]
    %v167 = vld [vmem:[#allocation7 + $0x68] sm:$0xff]
    %v168 = vld [vmem:[#allocation7 + $0x70] sm:$0xff]
    %v169 = vld [vmem:[#allocation7 + $0x78] sm:$0xff]
    %v170 = vld [vmem:[#allocation7 + $0x80] sm:$0xff]
    %v171 = vld [vmem:[#allocation7 + $0x88] sm:$0xff]
    %v172 = vld [vmem:[#allocation7 + $0x90] sm:$0xff]
    %v173 = vld [vmem:[#allocation7 + $0x98] sm:$0xff]
    %v174 = vld [vmem:[#allocation7 + $0xa0] sm:$0xff]
    %v175 = vld [vmem:[#allocation7 + $0xa8] sm:$0xff]
    %v176 = vld [vmem:[#allocation7 + $0xb0] sm:$0xff]
    %v177 = vld [vmem:[#allocation7 + $0xb8] sm:$0xff]
    %v178 = vld [vmem:[#allocation7 + $0xc0] sm:$0xff]
    %v179 = vld [vmem:[#allocation7 + $0xc8] sm:$0xff]
    %v180 = vld [vmem:[#allocation7 + $0xd0] sm:$0xff]
    %v181 = vld [vmem:[#allocation7 + $0xd8] sm:$0xff]
    %v182 = vld [vmem:[#allocation7 + $0xe0] sm:$0xff]
    %v183 = vld [vmem:[#allocation7 + $0xe8] sm:$0xff]
    %v184 = vld [vmem:[#allocation7 + $0xf0] sm:$0xff]
    %v185 = vld [vmem:[#allocation7 + $0xf8] sm:$0xff]
    %v186 = vld [vmem:[%s4] sm:$0x1]
    %v188 = vlaneseq
    %v189 = vshrl.u32 %v188, 7
    %v190 = vsub.s32 0, %v189
    %v191 = vrot.slane %v186, %v190
    %193 = vmatprep.subr.mxu0 0.0
    %194 = vmatpush1.msra.mxu0 %v154
    %195 = vmatprep.subr.mxu0 0.0
    %196 = vmatpush1.msra.mxu0 %v155
    %197 = vmatprep.subr.mxu0 0.0
    %198 = vmatpush1.msra.mxu0 %v156
    %199 = vmatprep.subr.mxu0 0.0
    %200 = vmatpush1.msra.mxu0 %v157
    %201 = vmatprep.subr.mxu0 0.0
    %202 = vmatpush1.msra.mxu0 %v158
    %203 = vmatprep.subr.mxu0 0.0
    %204 = vmatpush1.msra.mxu0 %v159
    %205 = vmatprep.subr.mxu0 0.0
    %206 = vmatpush1.msra.mxu0 %v160
    %207 = vmatprep.subr.mxu0 0.0
    %208 = vmatpush1.msra.mxu0 %v161
    %209 = vmatprep.subr.mxu0 0.0
    %210 = vmatpush1.msra.mxu0 %v162
    %211 = vmatprep.subr.mxu0 0.0
    %212 = vmatpush1.msra.mxu0 %v163
    %213 = vmatprep.subr.mxu0 0.0
    %214 = vmatpush1.msra.mxu0 %v164
    %215 = vmatprep.subr.mxu0 0.0
    %216 = vmatpush1.msra.mxu0 %v165
    %217 = vmatprep.subr.mxu0 0.0
    %218 = vmatpush1.msra.mxu0 %v166
    %219 = vmatprep.subr.mxu0 0.0
    %220 = vmatpush1.msra.mxu0 %v167
    %221 = vmatprep.subr.mxu0 0.0
    %222 = vmatpush1.msra.mxu0 %v168
    %223 = vmatprep.subr.mxu0 0.0
    %224 = vmatpush1.msra.mxu0 %v169
    %225 = vmatprep.subr.mxu0 0.0
    %226 = vmatpush1.msra.mxu0 %v170
    %227 = vmatprep.subr.mxu0 0.0
    %228 = vmatpush1.msra.mxu0 %v171
    %229 = vmatprep.subr.mxu0 0.0
    %230 = vmatpush1.msra.mxu0 %v172
    %231 = vmatprep.subr.mxu0 0.0
    %232 = vmatpush1.msra.mxu0 %v173
    %233 = vmatprep.subr.mxu0 0.0
    %234 = vmatpush1.msra.mxu0 %v174
    %235 = vmatprep.subr.mxu0 0.0
    %236 = vmatpush1.msra.mxu0 %v175
    %237 = vmatprep.subr.mxu0 0.0
    %238 = vmatpush1.msra.mxu0 %v176
    %239 = vmatprep.subr.mxu0 0.0
    %240 = vmatpush1.msra.mxu0 %v177
    %241 = vmatprep.subr.mxu0 0.0
    %242 = vmatpush1.msra.mxu0 %v178
    %243 = vmatprep.subr.mxu0 0.0
    %244 = vmatpush1.msra.mxu0 %v179
    %245 = vmatprep.subr.mxu0 0.0
    %246 = vmatpush1.msra.mxu0 %v180
    %247 = vmatprep.subr.mxu0 0.0
    %248 = vmatpush1.msra.mxu0 %v181
    %249 = vmatprep.subr.mxu0 0.0
    %250 = vmatpush1.msra.mxu0 %v182
    %251 = vmatprep.subr.mxu0 0.0
    %252 = vmatpush1.msra.mxu0 %v183
    %253 = vmatprep.subr.mxu0 0.0
    %254 = vmatpush1.msra.mxu0 %v184
    %255 = vmatprep.subr.mxu0 0.0
    %256 = vmatpush1.msra.mxu0 %v185
    %257 = vmatprep.mubr.f32.mxu0 %v153
    %258 = vmatmul.mubr.f32.gmra.mrb[0].mxu0 %v152
    %v259 = vpop.f32.mrb[0].mxu0
    %v260 = vadd.f32 %v191, %v259
    %v261 = vpop.f32.mrb[0].mxu0
    %262 = vdwg.mxu0
    %v263 = vlaneseq
    %v264 = vand.u32 %v263, 127
    %vm265 = vcmp.lt.s32.totalorder %v264, 8
    %vm266 = vcmp.eq.s32.totalorder %v264, 8
    %v267 = vsel %vm265, %v260, -inf
    %268 = vmax.xlane.f32.xlu0 %v267
    %v269 = vpop.xlane.xlu0 %268
    %v270 = vsub.f32 %v267, %v269
    %v271 = vmul.f32 %v270, 1.442695
    %v272 = vpow.pop %v271
    %273 = vadd.xlane.f32.xlu0 %v272
    %v274 = vpop.xlane.xlu0 %273
    %v275 = vrcp.pop %v274
    %v276 = vmul.f32 %v274, %v275
    %v277 = vsub.f32 2.0, %v276
    %v278 = vmul.f32 %v275, %v277
    %v279 = vmul.f32 %v272, %v278
    %v280 = vsel %vm266, %v260, %v279
    %281 = vst [vmem:[#allocation8] sm:$0xff] %v280
    // Predicated region
    $region34: #{actor_critic_forward_packed.1} parent=1 // pred_check
      _
    $region35: #{actor_critic_forward_packed.1} parent=1 // pred_check_branch
      %283 = sbr.rel (0) target = $region37
    $region36: #{actor_critic_forward_packed.1} parent=1 // pred_region
      %s285 = ssub.s32 128, 128
      %286 = vsyncadd [#allocation4], %s285
      %s288 = sshll.u32 [#allocation8], 4
      %s289 = int_to_ptr.vmem [resolvable:$true] %s288
      %291 = dma.vmem_to_hbm [thread:$0]  %s289, 128, %s5, [#allocation4]
    $region37: #{actor_critic_forward_packed.1} parent=1 // pred_fallthru
      _
    // Predicated region
    $region38: #{actor_critic_forward_packed.1} parent=1 // pred_check
      _
    $region39: #{actor_critic_forward_packed.1} parent=1 // pred_check_branch
      %293 = sbr.rel (0) target = $region41
    $region40: #{actor_critic_forward_packed.1} parent=1 // pred_region
      %294 = dma.done [#allocation4], 128
    $region41: #{actor_critic_forward_packed.1} parent=1 // pred_fallthru
      _
    %295 = vsyncpa [#allocation3], 1
    %296 = vsyncpa [#allocation6], 1
    %297 = vsyncpa [#allocation4], 1

</llo_original>
